<compile_context>
chip_gen: v7x
topology: tpu7x:2x2x1
jax: 0.10.0
libtpu: 0.0.40
codegen_flags: <defaults>
</compile_context>

<pallas_src>
import functools

import jax
import jax.numpy as jnp
from jax import lax
from jax.experimental import pallas as pl
from jax.experimental.pallas import tpu as pltpu

TAU = 0.4
INV_TAU = 1.0 / TAU
EPS = 1e-8
_VMEM_LIMIT_BYTES = 32 * 1024 * 1024   # raised scoped VMEM (v5e default is 16 MiB)
_TILE_BUDGET_BYTES = 24 * 1024 * 1024  # leave headroom inside the 32 MiB limit


def _srm_kernel(l_ref, g_ref, gt_ref, out_ref, *, mxu_dtype, approx_recip):
    # l_ref: (TILE_N, C), g_ref: (C, M), gt_ref: (M, C), out_ref: (TILE_N, C)
    l = l_ref[...]
    g = g_ref[...]
    g_t = gt_ref[...]

    l32 = l.astype(jnp.float32)
    g32 = g.astype(jnp.float32)

    # Inverse norms for the cosine similarity (rsqrt -> EUP slot); 1/tau is
    # folded into the per-column scale so the exp argument needs only one
    # extra (TILE_N, M) elementwise multiply.
    inv_l = lax.rsqrt(jnp.sum(l32 * l32, axis=1, keepdims=True) + EPS * EPS)  # (TILE_N, 1)
    inv_g = lax.rsqrt(jnp.sum(g32 * g32, axis=0, keepdims=True) + EPS * EPS)  # (1, M)

    # Cosine numerators for all (token, global-token) pairs on the MXU.
    dots = jnp.dot(l.astype(mxu_dtype), g.astype(mxu_dtype),
                   preferred_element_type=jnp.float32)                        # (TILE_N, M)

    # sim = exp(cos / tau)
    sim = jnp.exp(dots * (inv_l * (inv_g * INV_TAU)))                         # (TILE_N, M)

    # diag_embed(rowsum) -> inv -> bmm == divide each row by its sum; the
    # per-row scalar commutes with the matmul, so normalize afterwards on the
    # (TILE_N, C) result instead of the (TILE_N, M) similarity.
    row_sum = jnp.sum(sim, axis=1, keepdims=True)                             # (TILE_N, 1)

    # g_enh_raw = sim @ g^T  (canonical MXU contraction, g^T built in wrapper)
    g_enh = jnp.dot(sim.astype(mxu_dtype), g_t.astype(mxu_dtype),
                    preferred_element_type=jnp.float32)                       # (TILE_N, C)
    g_enh = g_enh * pl.reciprocal(row_sum, approx=approx_recip)

    out_ref[...] = (l32 + g_enh).astype(out_ref.dtype)


def _pick_tile_n(N, C, M, itemsize):
    """Largest token tile that keeps the double-buffered working set ~24 MiB."""
    fixed = 4 * C * M * itemsize       # double-buffered g and g^T blocks
    per_row = 4 * C * itemsize         # double-buffered l + out rows
    tile = max(8, (_TILE_BUDGET_BYTES - fixed) // per_row)
    tile = min(tile, 1024, N)
    if tile >= 256:
        tile = (tile // 256) * 256     # fill the 256-wide MXU on v6e / v7x
    elif tile >= 8:
        tile = (tile // 8) * 8         # sublane multiple
    return max(int(tile), 1)


def spatial_refinement(l_feat, g_feat, *, tile_n=None, fast=True):
    """l_feat: (B, N, C), g_feat: (B, C, M) -> (B, N, C).

    fast=True casts MXU operands to bf16 (f32 accumulation) and uses the
    approximate EUP reciprocal; fast=False keeps full f32 everywhere.
    """
    B, N, C = l_feat.shape
    Bg, Cg, M = g_feat.shape
    assert B == Bg and C == Cg

    itemsize = jnp.dtype(l_feat.dtype).itemsize
    if tile_n is None:
        tile_n = _pick_tile_n(N, C, M, itemsize)

    num_tiles = pl.cdiv(N, tile_n)
    n_pad = num_tiles * tile_n
    l_in = l_feat
    if n_pad != N:
        # Zero padding is numerically safe here (padded rows produce finite
        # garbage that is sliced away below).
        l_in = jnp.pad(l_feat, ((0, 0), (0, n_pad - N), (0, 0)))

    # One-time tiny (C, M) transpose in the wrapper so both in-kernel matmuls
    # are canonical MXU contractions (no in-kernel relayout of g).
    g_t = jnp.transpose(g_feat, (0, 2, 1))  # (B, M, C)

    mxu_dtype = jnp.bfloat16 if fast else l_feat.dtype
    kernel = functools.partial(_srm_kernel, mxu_dtype=mxu_dtype, approx_recip=fast)

    # TODO(synk): for real workloads where C is not a multiple of 128, pad C in
    # the wrapper so the output stores are lane-dense (unmasked vst).
    out = pl.pallas_call(
        kernel,
        out_shape=jax.ShapeDtypeStruct((B, n_pad, C), l_feat.dtype),
        grid_spec=pltpu.PrefetchScalarGridSpec(
            num_scalar_prefetch=0,
            grid=(B, num_tiles),
            in_specs=[
                # l: tiled along the token axis.
                pl.BlockSpec((pl.Squeezed(), tile_n, C), lambda b, n: (b, n, 0)),
                # g and g^T: resident across the n axis (index_map constant in n).
                pl.BlockSpec((pl.Squeezed(), C, M), lambda b, n: (b, 0, 0)),
                pl.BlockSpec((pl.Squeezed(), M, C), lambda b, n: (b, 0, 0)),
            ],
            out_specs=pl.BlockSpec((pl.Squeezed(), tile_n, C), lambda b, n: (b, n, 0)),
        ),
        compiler_params=pltpu.CompilerParams(
            dimension_semantics=("parallel", "parallel"),
            vmem_limit_bytes=_VMEM_LIMIT_BYTES,
        ),
    )(l_in, g_feat, g_t)

    if n_pad != N:
        out = out[:, :N, :]
    return out


def _reference(l_feat, g_feat):
    # Pure-JAX reference mirroring the PyTorch forward.
    l_tmp = l_feat[:, :, :, None]          # (B, N, C, 1)
    g_tmp = g_feat[:, None, :, :]          # (B, 1, C, M)
    num = jnp.sum(l_tmp * g_tmp, axis=2)   # (B, N, M)
    ln = jnp.sqrt(jnp.sum(l_tmp * l_tmp, axis=2))
    gn = jnp.sqrt(jnp.sum(g_tmp * g_tmp, axis=2))
    cos = num / (jnp.maximum(ln, EPS) * jnp.maximum(gn, EPS))
    sim = jnp.exp(cos / TAU)
    deg_inv = 1.0 / jnp.sum(sim, axis=2, keepdims=True)
    sim = deg_inv * sim
    g_perm = jnp.transpose(g_feat, (0, 2, 1))          # (B, M, C)
    g_enh = jnp.einsum("bnm,bmc->bnc", sim, g_perm)
    return l_feat + g_enh


if __name__ == "__main__":
    key = jax.random.PRNGKey(0)
    k1, k2 = jax.random.split(key)
    B, N, C, M = 2, 16, 32, 8
    l_feat = jax.random.normal(k1, (B, N, C), dtype=jnp.float32)
    g_feat = jax.random.normal(k2, (B, C, M), dtype=jnp.float32)

    ref = jax.block_until_ready(_reference(l_feat, g_feat))

    # Precise path: f32 MXU + exact reciprocal, tight tolerance vs reference.
    out_precise = jax.block_until_ready(
        spatial_refinement(l_feat, g_feat, fast=False))
    assert out_precise.shape == (B, N, C)
    assert jnp.max(jnp.abs(out_precise - ref)) < 1e-4

    # Fast path (default): bf16 MXU operands (f32 accumulation) + approx recip.
    out_fast = jax.block_until_ready(spatial_refinement(l_feat, g_feat))
    assert out_fast.shape == (B, N, C)
    assert jnp.max(jnp.abs(out_fast - ref)) < 5e-2

    print("KERNEL_OK")
</pallas_src>

<mosaic_0001>
module attributes {stable_mosaic.version = 11 : i64} {
  func.func @_srm_kernel(%arg0: i32, %arg1: i32, %arg2: memref<1x16x32xf32, #tpu.memory_space<vmem>>, %arg3: memref<1x32x8xf32, #tpu.memory_space<vmem>>, %arg4: memref<1x8x32xf32, #tpu.memory_space<vmem>>, %arg5: memref<1x16x32xf32, #tpu.memory_space<vmem>>) attributes {dimension_semantics = [#tpu.dimension_semantics<parallel>, #tpu.dimension_semantics<parallel>], iteration_bounds = array<i64: 2, 1>, scalar_prefetch = 0 : i64, scratch_operands = 0 : i64, tpu.core_type = #tpu.core_type<tc>, window_params = [{transform_indices = @transform_0, window_bounds = array<i64: 1, 16, 32>}, {transform_indices = @transform_1, window_bounds = array<i64: 1, 32, 8>}, {transform_indices = @transform_2, window_bounds = array<i64: 1, 8, 32>}, {transform_indices = @transform_3, window_bounds = array<i64: 1, 16, 32>}]} {
    %c0 = arith.constant 0 : index
    %c0_0 = arith.constant 0 : index
    %c0_1 = arith.constant 0 : index
    %0 = vector.load %arg2[%c0, %c0_0, %c0_1] : memref<1x16x32xf32, #tpu.memory_space<vmem>>, vector<1x16x32xf32>
    %1 = vector.shape_cast %0 : vector<1x16x32xf32> to vector<16x32xf32>
    %c0_2 = arith.constant 0 : index
    %c0_3 = arith.constant 0 : index
    %c0_4 = arith.constant 0 : index
    %2 = vector.load %arg3[%c0_2, %c0_3, %c0_4] : memref<1x32x8xf32, #tpu.memory_space<vmem>>, vector<1x32x8xf32>
    %3 = vector.shape_cast %2 : vector<1x32x8xf32> to vector<32x8xf32>
    %c0_5 = arith.constant 0 : index
    %c0_6 = arith.constant 0 : index
    %c0_7 = arith.constant 0 : index
    %4 = vector.load %arg4[%c0_5, %c0_6, %c0_7] : memref<1x8x32xf32, #tpu.memory_space<vmem>>, vector<1x8x32xf32>
    %5 = vector.shape_cast %4 : vector<1x8x32xf32> to vector<8x32xf32>
    %6 = arith.mulf %1, %1 : vector<16x32xf32>
    %cst = arith.constant dense<0.000000e+00> : vector<16xf32>
    %7 = vector.multi_reduction <add>, %6, %cst [1] : vector<16x32xf32> to vector<16xf32>
    %8 = vector.shape_cast %7 : vector<16xf32> to vector<16x1xf32>
    %cst_8 = arith.constant 1.000000e-16 : f32
    %9 = vector.broadcast %cst_8 : f32 to vector<16x1xf32>
    %10 = arith.addf %8, %9 : vector<16x1xf32>
    %11 = math.rsqrt %10 : vector<16x1xf32>
    %12 = arith.mulf %3, %3 : vector<32x8xf32>
    %cst_9 = arith.constant dense<0.000000e+00> : vector<8xf32>
    %13 = vector.multi_reduction <add>, %12, %cst_9 [0] : vector<32x8xf32> to vector<8xf32>
    %14 = vector.shape_cast %13 : vector<8xf32> to vector<1x8xf32>
    %cst_10 = arith.constant 1.000000e-16 : f32
    %15 = vector.broadcast %cst_10 : f32 to vector<1x8xf32>
    %16 = arith.addf %14, %15 : vector<1x8xf32>
    %17 = math.rsqrt %16 : vector<1x8xf32>
    %cst_11 = arith.constant dense<0.000000e+00> : vector<16x8xf32>
    %18 = tpu.matmul %1, %3, %cst_11 {dimension_numbers = #tpu.dot_dimension_numbers<[1], [0], [0], [1], [0, 0, 1, 1], [], []>} : vector<16x32xf32>, vector<32x8xf32>, vector<16x8xf32> -> vector<16x8xf32>
    %cst_12 = arith.constant 2.500000e+00 : f32
    %19 = vector.broadcast %cst_12 : f32 to vector<1x8xf32>
    %20 = arith.mulf %17, %19 : vector<1x8xf32>
    %21 = vector.broadcast %11 : vector<16x1xf32> to vector<16x8xf32>
    %22 = vector.broadcast %20 : vector<1x8xf32> to vector<16x8xf32>
    %23 = arith.mulf %21, %22 : vector<16x8xf32>
    %24 = arith.mulf %18, %23 : vector<16x8xf32>
    %25 = math.exp %24 : vector<16x8xf32>
    %cst_13 = arith.constant dense<0.000000e+00> : vector<16xf32>
    %26 = vector.multi_reduction <add>, %25, %cst_13 [1] : vector<16x8xf32> to vector<16xf32>
    %27 = vector.shape_cast %26 : vector<16xf32> to vector<16x1xf32>
    %cst_14 = arith.constant dense<0.000000e+00> : vector<16x32xf32>
    %28 = tpu.matmul %25, %5, %cst_14 {dimension_numbers = #tpu.dot_dimension_numbers<[1], [0], [0], [1], [0, 0, 1, 1], [], []>} : vector<16x8xf32>, vector<8x32xf32>, vector<16x32xf32> -> vector<16x32xf32>
    %29 = tpu.reciprocal %27 : vector<16x1xf32> -> vector<16x1xf32>
    %30 = vector.broadcast %29 : vector<16x1xf32> to vector<16x32xf32>
    %31 = arith.mulf %28, %30 : vector<16x32xf32>
    %32 = arith.addf %1, %31 : vector<16x32xf32>
    %c0_15 = arith.constant 0 : index
    %c0_16 = arith.constant 0 : index
    %c0_17 = arith.constant 0 : index
    %33 = vector.load %arg5[%c0_15, %c0_16, %c0_17] : memref<1x16x32xf32, #tpu.memory_space<vmem>>, vector<1x16x32xf32>
    %34 = vector.shape_cast %33 : vector<1x16x32xf32> to vector<16x32xf32>
    %35 = vector.shape_cast %32 : vector<16x32xf32> to vector<1x16x32xf32>
    tpu.vector_store %arg5[%c0_15, %c0_16, %c0_17], %35 {strides = array<i32>} : memref<1x16x32xf32, #tpu.memory_space<vmem>>, vector<1x16x32xf32>,
    return
  }
  func.func @transform_0(%arg0: i32, %arg1: i32) -> (i32, i32, i32) {
    %c0_i32 = arith.constant 0 : i32
    %c0_i32_0 = arith.constant 0 : i32
    return %arg0, %arg1, %c0_i32 : i32, i32, i32
  }
  func.func @transform_1(%arg0: i32, %arg1: i32) -> (i32, i32, i32) {
    %c0_i32 = arith.constant 0 : i32
    %c0_i32_0 = arith.constant 0 : i32
    %c0_i32_1 = arith.constant 0 : i32
    return %arg0, %c0_i32, %c0_i32_0 : i32, i32, i32
  }
  func.func @transform_2(%arg0: i32, %arg1: i32) -> (i32, i32, i32) {
    %c0_i32 = arith.constant 0 : i32
    %c0_i32_0 = arith.constant 0 : i32
    %c0_i32_1 = arith.constant 0 : i32
    return %arg0, %c0_i32, %c0_i32_0 : i32, i32, i32
  }
  func.func @transform_3(%arg0: i32, %arg1: i32) -> (i32, i32, i32) {
    %c0_i32 = arith.constant 0 : i32
    %c0_i32_0 = arith.constant 0 : i32
    return %arg0, %arg1, %c0_i32 : i32, i32, i32
  }
}

</mosaic_0001>

<llo_original>
// kernel: tpu_custom_call.1
$region0: #{tpu_custom_call.1}
  #allocation0 [shape = 'u32[]', space=smem, size = 0x4, offset = 0x4, fixed_abs, tag = 'smem constant byte address 0x4 - core index']
  #allocation1 [shape = 'u32[144,128]{1,0:T(1,128)}', space=vmem, size = 0x12000, scoped, tag = 'internal scratch']
  %s0 = inlined_call_operand.vmem [shape: f32[2,16,32], index: 0, kind: input, shape index: {}]
  %s1 = inlined_call_operand.vmem [shape: f32[2,32,8], index: 1, kind: input, shape index: {}]
  %s2 = inlined_call_operand.vmem [shape: f32[2,8,32], index: 2, kind: input, shape index: {}]
  %s3 = inlined_call_operand.hbm [shape: f32[2,16,32], index: 3, kind: output, shape index: {}]
  %s4 = sld [smem:[#allocation0]]
  $region45: #{tpu_custom_call.1} parent=0
    _
  %s6 = ssub.s32 1, %s4
  %s7 = scalar_select 0, %s6, %s4
  $region1: #{tpu_custom_call.1} parent=0
    #allocation2 [shape = 'u8[16384]{0}', space=vmem, size = 0x4000, scoped, tag = 'output window, operand 0']
    #allocation3 [shape = 's32[2]{0}', space=sflag, size = 0x8, scoped, tag = 'scoped memory for tpu_custom_call.1']
    %8 = vsyncpa [#allocation3], 0
    %s9 = scalar_lea.sflag [#allocation3], 1
    %10 = vsyncpa %s9, 0
    loop: start=0, step=1, limit=4
    $region2: #{tpu_custom_call.1} parent=1 // loop_pre_header
      _
    $region3: #{tpu_custom_call.1} parent=1 // loop_header
      %s12 = sphi 0, %s16
      %p13 = scmp.ge.s32.totalorder %s12, 4
      %s19 = sphi 0, %s31
      %s20 = sphi 0, %s27
      %s21 = sphi 0, %s19
      %s22 = sphi 0, %s20
      %s23 = sphi 0, %s21
      %s24 = sphi 0, %s22
      %s36 = sphi 0, %s38
      %s39 = sphi 0, %s36
      %s40 = sphi 0, %s39
      %s56 = sphi 0, %s40
      %s62 = sphi 0, %s64
      %s65 = sphi 0, %s62
      %s66 = sphi 0, %s65
      %s82 = sphi 0, %s66
      %s88 = sphi 0, %s90
      %s91 = sphi 0, %s88
      %s92 = sphi 0, %s91
      %s108 = sphi 0, %s92
      %s116 = sphi 0, %s118
      %s119 = sphi 0, %s116
      %s120 = sphi 0, %s119
      %s136 = sphi 0, %s120
    $region4: #{tpu_custom_call.1} parent=1 // loop_header_branch
      %15 = sbr.rel (%p13) target = $region8
    $region5: #{tpu_custom_call.1} parent=1 // loop_body
      %s17 = ssub.s32 %s12, 1
      %s18 = ssub.s32 %s12, 2
      %s25 = sadd.s32 1, %s20
      %p26 = scmp.ge.s32.totalorder %s25, 1
      %s27 = scalar_select %p26, 0, %s25
      %s28 = sadd.s32 1, %s19
      %s29 = scalar_select %p26, %s28, %s19
      %p30 = scmp.ge.s32.totalorder %s29, 2
      %s31 = scalar_select %p30, 0, %s29
      %s32 = ssub.s32 %s19, %s31
      %s33 = ssub.s32 %s20, %s27
      %s34 = sor.u32 %s32, %s33
      %p35 = scmp.eq.s32.totalorder %s34, 0
      %s37 = sadd.s32 %s36, 1
      %s38 = scalar_select %p35, %s36, %s37
      %p41 = pneg %p35
      %p42 = scmp.eq.s32.totalorder %s12, 1
      %p43 = por %p41, %p42
      %p44 = scmp.ne.s32.totalorder %s36, %s39
      %p45 = scmp.eq.s32.totalorder %s12, 0
      %p46 = por %p44, %p45
      %p47 = scmp.ne.s32.totalorder %s36, %s39
      %p48 = scmp.eq.s32.totalorder %s17, 1
      %p49 = por %p47, %p48
      %p50 = scmp.ne.s32.totalorder %s39, %s40
      %p51 = scmp.eq.s32.totalorder %s17, 0
      %p52 = por %p50, %p51
      %p53 = scmp.ne.s32.totalorder %s39, %s40
      %p54 = scmp.eq.s32.totalorder %s18, 1
      %p55 = por %p53, %p54
      %p57 = scmp.ne.s32.totalorder %s40, %s56
      %p58 = scmp.eq.s32.totalorder %s18, 0
      %p59 = por %p57, %p58
      %s60 = ssub.s32 %s19, %s31
      %p61 = scmp.eq.s32.totalorder %s60, 0
      %s63 = sadd.s32 %s62, 1
      %s64 = scalar_select %p61, %s62, %s63
      %p67 = pneg %p61
      %p68 = scmp.eq.s32.totalorder %s12, 1
      %p69 = por %p67, %p68
      %p70 = scmp.ne.s32.totalorder %s62, %s65
      %p71 = scmp.eq.s32.totalorder %s12, 0
      %p72 = por %p70, %p71
      %p73 = scmp.ne.s32.totalorder %s62, %s65
      %p74 = scmp.eq.s32.totalorder %s17, 1
      %p75 = por %p73, %p74
      %p76 = scmp.ne.s32.totalorder %s65, %s66
      %p77 = scmp.eq.s32.totalorder %s17, 0
      %p78 = por %p76, %p77
      %p79 = scmp.ne.s32.totalorder %s65, %s66
      %p80 = scmp.eq.s32.totalorder %s18, 1
      %p81 = por %p79, %p80
      %p83 = scmp.ne.s32.totalorder %s66, %s82
      %p84 = scmp.eq.s32.totalorder %s18, 0
      %p85 = por %p83, %p84
      %s86 = ssub.s32 %s19, %s31
      %p87 = scmp.eq.s32.totalorder %s86, 0
      %s89 = sadd.s32 %s88, 1
      %s90 = scalar_select %p87, %s88, %s89
      %p93 = pneg %p87
      %p94 = scmp.eq.s32.totalorder %s12, 1
      %p95 = por %p93, %p94
      %p96 = scmp.ne.s32.totalorder %s88, %s91
      %p97 = scmp.eq.s32.totalorder %s12, 0
      %p98 = por %p96, %p97
      %p99 = scmp.ne.s32.totalorder %s88, %s91
      %p100 = scmp.eq.s32.totalorder %s17, 1
      %p101 = por %p99, %p100
      %p102 = scmp.ne.s32.totalorder %s91, %s92
      %p103 = scmp.eq.s32.totalorder %s17, 0
      %p104 = por %p102, %p103
      %p105 = scmp.ne.s32.totalorder %s91, %s92
      %p106 = scmp.eq.s32.totalorder %s18, 1
      %p107 = por %p105, %p106
      %p109 = scmp.ne.s32.totalorder %s92, %s108
      %p110 = scmp.eq.s32.totalorder %s18, 0
      %p111 = por %p109, %p110
      %s112 = ssub.s32 %s19, %s31
      %s113 = ssub.s32 %s20, %s27
      %s114 = sor.u32 %s112, %s113
      %p115 = scmp.eq.s32.totalorder %s114, 0
      %s117 = sadd.s32 %s116, 1
      %s118 = scalar_select %p115, %s116, %s117
      %p121 = pneg %p115
      %p122 = scmp.eq.s32.totalorder %s12, 1
      %p123 = por %p121, %p122
      %p124 = scmp.ne.s32.totalorder %s116, %s119
      %p125 = scmp.eq.s32.totalorder %s12, 0
      %p126 = por %p124, %p125
      %p127 = scmp.ne.s32.totalorder %s116, %s119
      %p128 = scmp.eq.s32.totalorder %s17, 1
      %p129 = por %p127, %p128
      %p130 = scmp.ne.s32.totalorder %s119, %s120
      %p131 = scmp.eq.s32.totalorder %s17, 0
      %p132 = por %p130, %p131
      %p133 = scmp.ne.s32.totalorder %s119, %s120
      %p134 = scmp.eq.s32.totalorder %s18, 1
      %p135 = por %p133, %p134
      %p137 = scmp.ne.s32.totalorder %s120, %s136
      %p138 = scmp.eq.s32.totalorder %s18, 0
      %p139 = por %p137, %p138
      %p140 = scmp.le.s32.totalorder 1, %s12
      %p141 = scmp.lt.s32.totalorder %s12, 3
      %p142 = pnand %p140, %p141
      %p143 = pneg %p142
      // Predicated region
      $region9: #{tpu_custom_call.1} parent=5 // pred_check
        _
      $region10: #{tpu_custom_call.1} parent=5 // pred_check_branch
        %145 = sbr.rel (%p142) target = $region12
      $region11: #{tpu_custom_call.1} parent=5 // pred_region
        %s146 = ssub.s32 %s12, 1
      $region12: #{tpu_custom_call.1} parent=5 // pred_fallthru
        _
      %p147 = scmp.lt.s32.totalorder %s12, 2
      // Predicated region
      $region13: #{tpu_custom_call.1} parent=5 // pred_check
        %p148 = pneg %p147
      $region14: #{tpu_custom_call.1} parent=5 // pred_check_branch
        %150 = sbr.rel (%p148) target = $region16
      $region15: #{tpu_custom_call.1} parent=5 // pred_region
        // Predicated region
        $region17: #{tpu_custom_call.1} parent=15 // pred_check
          %p151 = pneg %p46
        $region18: #{tpu_custom_call.1} parent=15 // pred_check_branch
          %153 = sbr.rel (%p151) target = $region20
        $region19: #{tpu_custom_call.1} parent=15 // pred_region
          %s154 = smul.u32 2, %s20
          %p155 = scmp.lt.s32.totalorder %s19, 1
          %s156 = scalar_select %p155, %s19, 1
          %p157 = scmp.lt.s32.totalorder %s154, 1
          %s158 = scalar_select %p157, %s154, 1
          %s159 = smul.addr %s156, 2
          %s160 = sadd.s32 %s158, %s159
          %s161 = smul.addr %s160, 8
          %s162 = scalar_lea.vmem %s0, %s161
          %s163 = smul.u32 2, %s20
        $region20: #{tpu_custom_call.1} parent=15 // pred_fallthru
          _
        // Predicated region
        $region21: #{tpu_custom_call.1} parent=15 // pred_check
          %p164 = pneg %p72
        $region22: #{tpu_custom_call.1} parent=15 // pred_check_branch
          %166 = sbr.rel (%p164) target = $region24
        $region23: #{tpu_custom_call.1} parent=15 // pred_region
          %p167 = scmp.lt.s32.totalorder %s19, 1
          %s168 = scalar_select %p167, %s19, 1
          %s169 = smul.addr %s168, 4
          %s170 = smul.addr %s169, 8
          %s171 = scalar_lea.vmem %s1, %s170
        $region24: #{tpu_custom_call.1} parent=15 // pred_fallthru
          _
        // Predicated region
        $region25: #{tpu_custom_call.1} parent=15 // pred_check
          %p172 = pneg %p98
        $region26: #{tpu_custom_call.1} parent=15 // pred_check_branch
          %174 = sbr.rel (%p172) target = $region28
        $region27: #{tpu_custom_call.1} parent=15 // pred_region
          %p175 = scmp.lt.s32.totalorder %s19, 1
          %s176 = scalar_select %p175, %s19, 1
          %s177 = smul.addr %s176, 8
          %s178 = scalar_lea.vmem %s2, %s177
        $region28: #{tpu_custom_call.1} parent=15 // pred_fallthru
          _
      $region16: #{tpu_custom_call.1} parent=5 // pred_fallthru
        _
      %p179 = scmp.le.s32.totalorder 1, %s12
      %p180 = scmp.lt.s32.totalorder %s12, 3
      %p181 = pnand %p179, %p180
      %p182 = pneg %p181
      // Predicated region
      $region29: #{tpu_custom_call.1} parent=5 // pred_check
        _
      $region30: #{tpu_custom_call.1} parent=5 // pred_check_branch
        %184 = sbr.rel (%p181) target = $region32
      $region31: #{tpu_custom_call.1} parent=5 // pred_region
        %s185 = ssub.s32 %s12, 1
        %s186 = smul.u32 2, %s22
        %p187 = scmp.lt.s32.totalorder %s21, 1
        %s188 = scalar_select %p187, %s21, 1
        %p189 = scmp.lt.s32.totalorder %s186, 1
        %s190 = scalar_select %p189, %s186, 1
        %s191 = smul.addr %s188, 2
        %s192 = sadd.s32 %s190, %s191
        %s193 = smul.addr %s192, 8
        %s194 = scalar_lea.vmem %s0, %s193
        %p195 = pneg %p52
        %p196 = pneg %p49
        %p197 = scmp.lt.s32.totalorder %s21, 1
        %s198 = scalar_select %p197, %s21, 1
        %s199 = smul.addr %s198, 4
        %s200 = smul.addr %s199, 8
        %s201 = scalar_lea.vmem %s1, %s200
        %p202 = pneg %p78
        %p203 = pneg %p75
        %p204 = scmp.lt.s32.totalorder %s21, 1
        %s205 = scalar_select %p204, %s21, 1
        %s206 = smul.addr %s205, 8
        %s207 = scalar_lea.vmem %s2, %s206
        %p208 = pneg %p104
        %p209 = pneg %p101
        %p210 = pneg %p132
        %p211 = pneg %p129
        %s212 = sand.u32 %s119, 1
        %s213 = scalar_lea.sflag [#allocation3], %s212
        %s214 = sand.u32 %s119, 1
        %s215 = smul.addr %s214, 16
        %s216 = scalar_lea.vmem [#allocation2], %s215
        %s217 = smul.u32 2, %s22
        %p218 = scmp.lt.s32.totalorder %s21, 1
        %s219 = scalar_select %p218, %s21, 1
        %p220 = scmp.lt.s32.totalorder %s217, 1
        %s221 = scalar_select %p220, %s217, 1
        %s222 = smul.addr %s219, 2
        %s223 = sadd.s32 %s221, %s222
        %s224 = smul.addr %s223, 8
        %s225 = scalar_lea.vmem %s0, %s224
        %s226 = smul.u32 2, %s22
        %p227 = scmp.lt.s32.totalorder %s21, 1
        %s228 = scalar_select %p227, %s21, 1
        %s229 = smul.addr %s228, 4
        %s230 = smul.addr %s229, 8
        %s231 = scalar_lea.vmem %s1, %s230
        %p232 = scmp.lt.s32.totalorder %s21, 1
        %s233 = scalar_select %p232, %s21, 1
        %s234 = smul.addr %s233, 8
        %s235 = scalar_lea.vmem %s2, %s234
        %s236 = smul.u32 2, %s22
        %v237 = vld [vmem:[%s225] sm:$0xff]
        %v238 = vld [vmem:[%s225 + $0x8] sm:$0xff]
        %v239 = vld [vmem:[%s231] sm:$0xff]
        %v240 = vld [vmem:[%s231 + $0x8] sm:$0xff]
        %v241 = vld [vmem:[%s231 + $0x10] sm:$0xff]
        %v242 = vld [vmem:[%s231 + $0x18] sm:$0xff]
        %v243 = vld [vmem:[%s235] sm:$0xff]
        %v244 = vmul.f32 %v237, %v237
        %v245 = vmul.f32 %v238, %v238
        %vm246 = vcmask 261120
        %v247 = vsel %vm246, %v244, 0.0
        %248 = vadd.xlane.f32.xlu0 %v247
        %v249 = vpop.xlane.xlu0 %248
        %v250 = vsel %vm246, %v245, 0.0
        %251 = vadd.xlane.f32.xlu0 %v250
        %v252 = vpop.xlane.xlu0 %251
        %v253 = vadd.f32 %v249, 1e-16
        %v254 = vadd.f32 %v252, 1e-16
        %v255 = vrsqrt.pop %v253
        %v256 = vrsqrt.pop %v254
        %v257 = vmul.f32 %v239, %v239
        %v258 = vmul.f32 %v240, %v240
        %v259 = vmul.f32 %v241, %v241
        %v260 = vmul.f32 %v242, %v242
        %vm261 = vcmask 64512
        %v262 = vsel %vm261, %v257, 0.0
        %v263 = vsel %vm261, %v258, 0.0
        %v264 = vadd.f32 %v262, %v263
        %v265 = vsel %vm261, %v259, 0.0
        %v266 = vadd.f32 %v264, %v265
        %v267 = vsel %vm261, %v260, 0.0
        %v268 = vadd.f32 %v266, %v267
        %v269 = vrot.slane %v268, 4
        %v270 = vadd.f32 %v268, %v269
        %v271 = vrot.slane %v270, 2
        %v272 = vadd.f32 %v270, %v271
        %v273 = vrot.slane %v272, 1
        %v274 = vadd.f32 %v272, %v273
        %v275 = vadd.f32 %v274, 1e-16
        %v276 = vrsqrt.pop %v275
        %v278 = vsel %vm246, %v237, 0
        %v281 = vsel %vm246, %v238, 0
        %283 = vmatprep.subr.mxu0 0.0
        %284 = vmatpush1.msra.mxu0 %v239
        %285 = vmatprep.subr.mxu0 0.0
        %286 = vmatpush1.msra.mxu0 %v240
        %287 = vmatprep.subr.mxu0 0.0
        %288 = vmatpush1.msra.mxu0 %v241
        %289 = vmatprep.subr.mxu0 0.0
        %290 = vmatpush1.msra.mxu0 %v242
        %291 = vmatprep.subr.mxu0 0.0
        %292 = vmatpush1.msra.mxu0 0.0
        %293 = vmatprep.subr.mxu0 0.0
        %294 = vmatpush1.msra.mxu0 0.0
        %295 = vmatprep.subr.mxu0 0.0
        %296 = vmatpush1.msra.mxu0 0.0
        %297 = vmatprep.subr.mxu0 0.0
        %298 = vmatpush1.msra.mxu0 0.0
        %299 = vmatprep.subr.mxu0 0.0
        %300 = vmatpush1.msra.mxu0 0.0
        %301 = vmatprep.subr.mxu0 0.0
        %302 = vmatpush1.msra.mxu0 0.0
        %303 = vmatprep.subr.mxu0 0.0
        %304 = vmatpush1.msra.mxu0 0.0
        %305 = vmatprep.subr.mxu0 0.0
        %306 = vmatpush1.msra.mxu0 0.0
        %307 = vmatprep.subr.mxu0 0.0
        %308 = vmatpush1.msra.mxu0 0.0
        %309 = vmatprep.subr.mxu0 0.0
        %310 = vmatpush1.msra.mxu0 0.0
        %311 = vmatprep.subr.mxu0 0.0
        %312 = vmatpush1.msra.mxu0 0.0
        %313 = vmatprep.subr.mxu0 0.0
        %314 = vmatpush1.msra.mxu0 0.0
        %315 = vmatprep.subr.mxu0 0.0
        %316 = vmatpush1.msra.mxu0 0.0
        %317 = vmatprep.subr.mxu0 0.0
        %318 = vmatpush1.msra.mxu0 0.0
        %319 = vmatprep.subr.mxu0 0.0
        %320 = vmatpush1.msra.mxu0 0.0
        %321 = vmatprep.subr.mxu0 0.0
        %322 = vmatpush1.msra.mxu0 0.0
        %323 = vmatprep.subr.mxu0 0.0
        %324 = vmatpush1.msra.mxu0 0.0
        %325 = vmatprep.subr.mxu0 0.0
        %326 = vmatpush1.msra.mxu0 0.0
        %327 = vmatprep.subr.mxu0 0.0
        %328 = vmatpush1.msra.mxu0 0.0
        %329 = vmatprep.subr.mxu0 0.0
        %330 = vmatpush1.msra.mxu0 0.0
        %331 = vmatprep.subr.mxu0 0.0
        %332 = vmatpush1.msra.mxu0 0.0
        %333 = vmatprep.subr.mxu0 0.0
        %334 = vmatpush1.msra.mxu0 0.0
        %335 = vmatprep.subr.mxu0 0.0
        %336 = vmatpush1.msra.mxu0 0.0
        %337 = vmatprep.subr.mxu0 0.0
        %338 = vmatpush1.msra.mxu0 0.0
        %339 = vmatprep.subr.mxu0 0.0
        %340 = vmatpush1.msra.mxu0 0.0
        %341 = vmatprep.subr.mxu0 0.0
        %342 = vmatpush1.msra.mxu0 0.0
        %343 = vmatprep.subr.mxu0 0.0
        %344 = vmatpush1.msra.mxu0 0.0
        %345 = vmatprep.subr.mxu0 0.0
        %346 = vmatpush1.msra.mxu0 0.0
        %347 = vmatprep.mubr.f32.mxu0 0.0
        %348 = vmatmul.mubr.f32.gmra.mrb[0].mxu0 %v278
        %v349 = vpop.f32.mrb[0].mxu0
        %v350 = vadd.f32 0.0, %v349
        %v351 = vpop.f32.mrb[0].mxu0
        %352 = vmatprep.mubr.f32.mxu0 0.0
        %353 = vmatmul.mubr.f32.gmra.mrb[0].mxu0 %v281
        %v354 = vpop.f32.mrb[0].mxu0
        %v355 = vadd.f32 0.0, %v354
        %v356 = vpop.f32.mrb[0].mxu0
        %357 = vdwg.mxu0
        %v358 = vmul.f32 %v276, 2.5
        %v359 = vmul.f32 %v255, %v358
        %v360 = vmul.f32 %v256, %v358
        %v361 = vmul.f32 %v350, %v359
        %v362 = vmul.f32 %v355, %v360
        %v363 = vmul.f32 %v361, 1.442695
        %v364 = vpow.pop %v363
        %v365 = vmul.f32 %v362, 1.442695
        %v366 = vpow.pop %v365
        %v367 = vsel %vm261, %v364, 0.0
        %368 = vadd.xlane.f32.xlu0 %v367
        %v369 = vpop.xlane.xlu0 %368
        %v370 = vsel %vm261, %v366, 0.0
        %371 = vadd.xlane.f32.xlu0 %v370
        %v372 = vpop.xlane.xlu0 %371
        %v374 = vsel %vm261, %v364, 0
        %v377 = vsel %vm261, %v366, 0
        %379 = vmatprep.subr.mxu0 0.0
        %380 = vmatpush1.msra.mxu0 %v243
        %381 = vmatprep.subr.mxu0 0.0
        %382 = vmatpush1.msra.mxu0 0.0
        %383 = vmatprep.subr.mxu0 0.0
        %384 = vmatpush1.msra.mxu0 0.0
        %385 = vmatprep.subr.mxu0 0.0
        %386 = vmatpush1.msra.mxu0 0.0
        %387 = vmatprep.subr.mxu0 0.0
        %388 = vmatpush1.msra.mxu0 0.0
        %389 = vmatprep.subr.mxu0 0.0
        %390 = vmatpush1.msra.mxu0 0.0
        %391 = vmatprep.subr.mxu0 0.0
        %392 = vmatpush1.msra.mxu0 0.0
        %393 = vmatprep.subr.mxu0 0.0
        %394 = vmatpush1.msra.mxu0 0.0
        %395 = vmatprep.subr.mxu0 0.0
        %396 = vmatpush1.msra.mxu0 0.0
        %397 = vmatprep.subr.mxu0 0.0
        %398 = vmatpush1.msra.mxu0 0.0
        %399 = vmatprep.subr.mxu0 0.0
        %400 = vmatpush1.msra.mxu0 0.0
        %401 = vmatprep.subr.mxu0 0.0
        %402 = vmatpush1.msra.mxu0 0.0
        %403 = vmatprep.subr.mxu0 0.0
        %404 = vmatpush1.msra.mxu0 0.0
        %405 = vmatprep.subr.mxu0 0.0
        %406 = vmatpush1.msra.mxu0 0.0
        %407 = vmatprep.subr.mxu0 0.0
        %408 = vmatpush1.msra.mxu0 0.0
        %409 = vmatprep.subr.mxu0 0.0
        %410 = vmatpush1.msra.mxu0 0.0
        %411 = vmatprep.subr.mxu0 0.0
        %412 = vmatpush1.msra.mxu0 0.0
        %413 = vmatprep.subr.mxu0 0.0
        %414 = vmatpush1.msra.mxu0 0.0
        %415 = vmatprep.subr.mxu0 0.0
        %416 = vmatpush1.msra.mxu0 0.0
        %417 = vmatprep.subr.mxu0 0.0
        %418 = vmatpush1.msra.mxu0 0.0
        %419 = vmatprep.subr.mxu0 0.0
        %420 = vmatpush1.msra.mxu0 0.0
        %421 = vmatprep.subr.mxu0 0.0
        %422 = vmatpush1.msra.mxu0 0.0
        %423 = vmatprep.subr.mxu0 0.0
        %424 = vmatpush1.msra.mxu0 0.0
        %425 = vmatprep.subr.mxu0 0.0
        %426 = vmatpush1.msra.mxu0 0.0
        %427 = vmatprep.subr.mxu0 0.0
        %428 = vmatpush1.msra.mxu0 0.0
        %429 = vmatprep.subr.mxu0 0.0
        %430 = vmatpush1.msra.mxu0 0.0
        %431 = vmatprep.subr.mxu0 0.0
        %432 = vmatpush1.msra.mxu0 0.0
        %433 = vmatprep.subr.mxu0 0.0
        %434 = vmatpush1.msra.mxu0 0.0
        %435 = vmatprep.subr.mxu0 0.0
        %436 = vmatpush1.msra.mxu0 0.0
        %437 = vmatprep.subr.mxu0 0.0
        %438 = vmatpush1.msra.mxu0 0.0
        %439 = vmatprep.subr.mxu0 0.0
        %440 = vmatpush1.msra.mxu0 0.0
        %441 = vmatprep.subr.mxu0 0.0
        %442 = vmatpush1.msra.mxu0 0.0
        %443 = vmatprep.mubr.f32.mxu0 0.0
        %444 = vmatmul.mubr.f32.gmra.mrb[0].mxu0 %v374
        %v445 = vpop.f32.mrb[0].mxu0
        %v446 = vadd.f32 0.0, %v445
        %v447 = vpop.f32.mrb[0].mxu0
        %448 = vmatprep.mubr.f32.mxu0 0.0
        %449 = vmatmul.mubr.f32.gmra.mrb[0].mxu0 %v377
        %v450 = vpop.f32.mrb[0].mxu0
        %v451 = vadd.f32 0.0, %v450
        %v452 = vpop.f32.mrb[0].mxu0
        %453 = vdwg.mxu0
        %v454 = vrcp.pop %v369
        %v455 = vrcp.pop %v372
        %v456 = vmul.f32 %v446, %v454
        %v457 = vmul.f32 %v451, %v455
        %v458 = vadd.f32 %v237, %v456
        %v459 = vadd.f32 %v238, %v457
        %460 = vst.msk [vmem:[%s216] sm:$0xff] %vm246, %v458
        %461 = vst.msk [vmem:[%s216 + $0x8] sm:$0xff] %vm246, %v459
        %s462 = sand.u32 %s119, 1
        %s463 = scalar_lea.sflag [#allocation3], %s462
        %s464 = sand.u32 %s119, 1
        %s465 = smul.addr %s464, 16
        %s466 = scalar_lea.vmem [#allocation2], %s465
        // Predicated region
        $region33: #{tpu_custom_call.1} parent=31 // pred_check
          %p467 = pneg %p129
        $region34: #{tpu_custom_call.1} parent=31 // pred_check_branch
          %469 = sbr.rel (%p467) target = $region36
        $region35: #{tpu_custom_call.1} parent=31 // pred_region
          %s470 = smul.u32 2, %s22
          %s472 = ssub.s32 256, 256
          %473 = vsyncadd %s463, %s472
          %s474 = smul.addr %s21, 2
          %s475 = sadd.s32 %s470, %s474
          %s476 = smul.addr %s475, 128
          %s477 = scalar_lea.hbm %s3, %s476
          %s478 = sshll.u32 %s466, 4
          %s479 = int_to_ptr.vmem [resolvable:$true] %s478
          %484 = dma.vmem_to_hbm [thread:$0]  %s479, 256, %s477, %s463, 128, 128, 8
        $region36: #{tpu_custom_call.1} parent=31 // pred_fallthru
          _
      $region32: #{tpu_custom_call.1} parent=5 // pred_fallthru
        _
      %p485 = scmp.le.s32.totalorder 2, %s12
      // Predicated region
      $region37: #{tpu_custom_call.1} parent=5 // pred_check
        %p486 = pneg %p485
      $region38: #{tpu_custom_call.1} parent=5 // pred_check_branch
        %488 = sbr.rel (%p486) target = $region40
      $region39: #{tpu_custom_call.1} parent=5 // pred_region
        %s489 = ssub.s32 %s12, 2
        // Predicated region
        $region41: #{tpu_custom_call.1} parent=39 // pred_check
          %p490 = pneg %p135
        $region42: #{tpu_custom_call.1} parent=39 // pred_check_branch
          %492 = sbr.rel (%p490) target = $region44
        $region43: #{tpu_custom_call.1} parent=39 // pred_region
          %s493 = sand.u32 %s120, 1
          %s494 = scalar_lea.sflag [#allocation3], %s493
          %s495 = sand.u32 %s120, 1
          %s496 = smul.addr %s495, 16
          %s497 = scalar_lea.vmem [#allocation2], %s496
          %498 = dma.done %s494, 256
        $region44: #{tpu_custom_call.1} parent=39 // pred_fallthru
          _
      $region40: #{tpu_custom_call.1} parent=5 // pred_fallthru
        _
    $region6: #{tpu_custom_call.1} parent=1 // loop_footer
      %s16 = sadd.s32 1, %s12
    $region7: #{tpu_custom_call.1} parent=1 // loop_footer_branch
      %11 = sbr.rel target = $region3
    $region8: #{tpu_custom_call.1} parent=1 // loop_exit
      _
    %499 = vsyncpa [#allocation3], 1
    %s500 = scalar_lea.sflag [#allocation3], 1
    %501 = vsyncpa %s500, 1

</llo_original>
